<compile_context>
chip_gen: v6e
topology: v6e:2x2x1
jax: 0.10.0
libtpu: 0.0.40
codegen_flags: <defaults>
</compile_context>

<pallas_src>
import functools

import numpy as np
import jax
import jax.numpy as jnp
from jax.experimental import pallas as pl
from jax.experimental.pallas import tpu as pltpu


# ---------------------------------------------------------------------------
# padding / tiling helpers
# ---------------------------------------------------------------------------
def _round_up(x, m):
    return ((x + m - 1) // m) * m


def _pad_m(m):
    # Keep M padding minimal: single block up to 1024 rows, else 512-row tiles.
    if m <= 1024:
        return _round_up(m, 128)
    return _round_up(m, 512)


def _tile(padded, cap):
    """Largest multiple-of-128 divisor of `padded` that is <= cap."""
    if padded <= cap:
        return padded
    t = cap
    while padded % t:
        t -= 128
    return t


# ---------------------------------------------------------------------------
# Pallas GEMM kernel (bf16 x bf16 -> f32 accumulate, bias + ReLU epilogue)
# ---------------------------------------------------------------------------
def _matmul_kernel(a_ref, b_ref, bias_ref, o_ref, acc_ref, *, apply_relu):
    @pl.when(pl.program_id(2) == 0)
    def _():
        acc_ref[...] = jnp.zeros_like(acc_ref)

    acc_ref[...] += jnp.dot(a_ref[...], b_ref[...],
                            preferred_element_type=jnp.float32)

    @pl.when(pl.program_id(2) == pl.num_programs(2) - 1)
    def _():
        out = acc_ref[...] + bias_ref[...]
        if apply_relu:
            out = jnp.maximum(out, 0.0)
        o_ref[...] = out.astype(o_ref.dtype)


@functools.partial(jax.jit, static_argnames=("apply_relu", "out_dtype"))
def _matmul_padded(a, b, bias, apply_relu, out_dtype):
    Mp, Kp = a.shape
    _, Np = b.shape
    tm = Mp if Mp <= 1024 else 512           # _pad_m guarantees divisibility
    tk = Kp if Kp <= 2048 else _tile(Kp, 2048)
    tn = _tile(Np, 256)
    grid = (Mp // tm, Np // tn, Kp // tk)
    return pl.pallas_call(
        functools.partial(_matmul_kernel, apply_relu=apply_relu),
        out_shape=jax.ShapeDtypeStruct((Mp, Np), out_dtype),
        grid_spec=pltpu.PrefetchScalarGridSpec(
            num_scalar_prefetch=0,
            grid=grid,
            in_specs=[
                pl.BlockSpec((tm, tk), lambda i, j, k: (i, k)),
                pl.BlockSpec((tk, tn), lambda i, j, k: (k, j)),
                pl.BlockSpec((1, tn), lambda i, j, k: (0, j)),
            ],
            out_specs=pl.BlockSpec((tm, tn), lambda i, j, k: (i, j)),
            scratch_shapes=[pltpu.VMEM((tm, tn), jnp.float32)],
        ),
        compiler_params=pltpu.CompilerParams(
            dimension_semantics=("parallel", "parallel", "arbitrary")),
    )(a, b, bias)


def matmul(a, b, bias=None, apply_relu=False, out_dtype=jnp.bfloat16):
    """(M,K)@(K,N) [+bias, relu] with unpadded b (used for the bilinear resize)."""
    M, K = a.shape
    K2, N = b.shape
    assert K == K2
    Kp, Np = _round_up(K, 128), _round_up(N, 128)
    Mp = _pad_m(M)
    a_p = jnp.pad(a.astype(jnp.bfloat16), ((0, Mp - M), (0, Kp - K)))
    b_p = jnp.pad(b.astype(jnp.bfloat16), ((0, Kp - K), (0, Np - N)))
    if bias is None:
        bias_p = jnp.zeros((1, Np), jnp.float32)
    else:
        bias_p = jnp.pad(bias.astype(jnp.float32).reshape(1, N),
                         ((0, 0), (0, Np - N)))
    out = _matmul_padded(a_p, b_p, bias_p,
                         apply_relu=apply_relu, out_dtype=out_dtype)
    return out[:M, :N]


def matmul_prepadded(a, wmat_p, bias_p, n_valid,
                     apply_relu=True, out_dtype=jnp.bfloat16):
    """GEMM against a weight matrix that was padded + cast to bf16 at build time."""
    M, K = a.shape
    Kp, Np = wmat_p.shape
    Mp = _pad_m(M)
    a_p = jnp.pad(a.astype(jnp.bfloat16), ((0, Mp - M), (0, Kp - K)))
    out = _matmul_padded(a_p, wmat_p, bias_p,
                         apply_relu=apply_relu, out_dtype=out_dtype)
    return out[:M, :n_valid]


# ---------------------------------------------------------------------------
# Pallas elementwise 3-way combine (separable 3x3 max / avg pooling)
# ---------------------------------------------------------------------------
_POOL_ROWS = 32
_POOL_COLS = 4096
_POOL_BLK = _POOL_ROWS * _POOL_COLS      # 131072 elements per grid step


def _combine3_kernel(a_ref, b_ref, c_ref, o_ref, *, mode, scale):
    if mode == "max":
        o_ref[...] = jnp.maximum(jnp.maximum(a_ref[...], b_ref[...]), c_ref[...])
    else:  # "sum" (avg pool: count_include_pad=True -> scale=1/9 on final pass)
        s = (a_ref[...].astype(jnp.float32) + b_ref[...].astype(jnp.float32)
             + c_ref[...].astype(jnp.float32)) * scale
        o_ref[...] = s.astype(o_ref.dtype)


@functools.partial(jax.jit, static_argnames=("mode", "scale"))
def _combine3_flat(a, b, c, mode, scale):
    R, Ccols = a.shape
    return pl.pallas_call(
        functools.partial(_combine3_kernel, mode=mode, scale=scale),
        out_shape=jax.ShapeDtypeStruct((R, Ccols), a.dtype),
        grid_spec=pltpu.PrefetchScalarGridSpec(
            num_scalar_prefetch=0,
            grid=(R // _POOL_ROWS,),
            in_specs=[pl.BlockSpec((_POOL_ROWS, _POOL_COLS), lambda i: (i, 0))] * 3,
            out_specs=pl.BlockSpec((_POOL_ROWS, _POOL_COLS), lambda i: (i, 0)),
        ),
        compiler_params=pltpu.CompilerParams(dimension_semantics=("parallel",)),
    )(a, b, c)


def _combine3(x0, x1, x2, mode, scale=1.0):
    shape = x0.shape
    L = int(np.prod(shape))
    Lp = _round_up(L, _POOL_BLK)

    def prep(t):
        return jnp.pad(t.reshape(-1), (0, Lp - L)).reshape(Lp // _POOL_COLS,
                                                           _POOL_COLS)

    out = _combine3_flat(prep(x0), prep(x1), prep(x2), mode=mode, scale=scale)
    return out.reshape(-1)[:L].reshape(shape)


def pool2d(x, ksize, stride, padding, mode):
    """Separable 3x3 max / avg pool, NHWC.  Reduction runs in Pallas."""
    assert ksize == 3
    B, H, W, C = x.shape
    if padding:
        # TODO(synk): zero padding is only correct for avg (count_include_pad)
        # and post-ReLU max; a padded max pool would need -inf fill.
        x = jnp.pad(x, ((0, 0), (padding, padding), (padding, padding), (0, 0)))
    Hp, Wp = x.shape[1], x.shape[2]
    Ho = (Hp - ksize) // stride + 1
    Wo = (Wp - ksize) // stride + 1
    kmode = "max" if mode == "max" else "sum"
    # pass 1: reduce 3-wide along H
    h0 = x[:, 0:stride * Ho:stride]
    h1 = x[:, 1:1 + stride * Ho:stride]
    h2 = x[:, 2:2 + stride * Ho:stride]
    y = _combine3(h0, h1, h2, kmode, 1.0)                     # (B, Ho, Wp, C)
    # pass 2: reduce 3-wide along W
    w0 = y[:, :, 0:stride * Wo:stride]
    w1 = y[:, :, 1:1 + stride * Wo:stride]
    w2 = y[:, :, 2:2 + stride * Wo:stride]
    fin_scale = (1.0 / 9.0) if kmode == "sum" else 1.0
    return _combine3(w0, w1, w2, kmode, fin_scale)            # (B, Ho, Wo, C)


# ---------------------------------------------------------------------------
# global mean pool (lane-dense output over channels)
# ---------------------------------------------------------------------------
def _gap_kernel(x_ref, o_ref, *, inv_hw):
    s = jnp.sum(x_ref[...].astype(jnp.float32), axis=1) * inv_hw
    o_ref[...] = s.astype(o_ref.dtype)


def global_mean_pool(x):
    """torch.mean(x.view(B, C, -1), 2) on NHWC input -> (B, C) float32."""
    B, H, W, C = x.shape
    HW = H * W
    xr = x.reshape(B, HW, C)
    Cp = _round_up(C, 128)
    if Cp != C:
        xr = jnp.pad(xr, ((0, 0), (0, 0), (0, Cp - C)))
    tc = _tile(Cp, 512)
    out = pl.pallas_call(
        functools.partial(_gap_kernel, inv_hw=1.0 / HW),
        out_shape=jax.ShapeDtypeStruct((B, Cp), jnp.float32),
        grid_spec=pltpu.PrefetchScalarGridSpec(
            num_scalar_prefetch=0,
            grid=(Cp // tc,),
            in_specs=[pl.BlockSpec((B, HW, tc), lambda i: (0, 0, i))],
            out_specs=pl.BlockSpec((B, tc), lambda i: (0, i)),
        ),
        compiler_params=pltpu.CompilerParams(dimension_semantics=("parallel",)),
    )(xr)
    return out[:, :C]


# ---------------------------------------------------------------------------
# conv (im2col GEMM) and preprocessing (resize; normalization folded into conv1)
# ---------------------------------------------------------------------------
def conv_bn_relu(x, p):
    """Conv2d(bias=False) + folded BN + ReLU on NHWC bf16 activations."""
    B, H, W, C = x.shape
    kh, kw = p["kh"], p["kw"]
    sh, sw = p["stride"]
    ph, pw = p["padding"]
    if ph or pw:
        x = jnp.pad(x, ((0, 0), (ph, ph), (pw, pw), (0, 0)))
    Hp, Wp = x.shape[1], x.shape[2]
    Ho = (Hp - kh) // sh + 1
    Wo = (Wp - kw) // sw + 1
    if kh == 1 and kw == 1 and sh == 1 and sw == 1:
        a = x.reshape(B * Ho * Wo, C)                    # 1x1 conv: no im2col
    else:
        cols = [x[:, i:i + sh * Ho:sh, j:j + sw * Wo:sw, :]
                for i in range(kh) for j in range(kw)]
        a = jnp.concatenate(cols, axis=-1).reshape(B * Ho * Wo, kh * kw * C)
    out = matmul_prepadded(a, p["wmat"], p["bias"], p["cout"])
    return out.reshape(B, Ho, Wo, p["cout"])


def apply_basic_conv(p, x):
    return conv_bn_relu(x, p)


def _interp_matrix(in_size, out_size):
    # bilinear, align_corners=True
    pos = np.arange(out_size) * (in_size - 1) / (out_size - 1)
    i0 = np.clip(np.floor(pos).astype(np.int64), 0, in_size - 1)
    i1 = np.minimum(i0 + 1, in_size - 1)
    w1 = (pos - i0).astype(np.float32)
    w0 = (1.0 - w1).astype(np.float32)
    A = np.zeros((out_size, in_size), np.float32)
    np.add.at(A, (np.arange(out_size), i0), w0)
    np.add.at(A, (np.arange(out_size), i1), w1)
    return A


def preprocess(x):
    """NCHW [-1,1] input -> 299x299 NHWC bf16.

    The (x+1)/2 and per-channel (x-mean)/std normalization are folded into
    Conv2d_1a_3x3's weights (exactly equivalent: align_corners=True bilinear
    interpolation weights sum to 1 per output pixel, so the per-channel affine
    commutes with the resize)."""
    B, C, H, W = x.shape
    if H == 299 and W == 299:
        return jnp.transpose(x, (0, 2, 3, 1)).astype(jnp.bfloat16)
    Aw = jnp.asarray(_interp_matrix(W, 299).T, jnp.bfloat16)   # (W, 299)
    Ah = jnp.asarray(_interp_matrix(H, 299).T, jnp.bfloat16)   # (H, 299)
    xb = x.astype(jnp.bfloat16)
    y = matmul(xb.reshape(B * C * H, W), Aw)                   # width pass
    y = y.reshape(B, C, H, 299).transpose(0, 1, 3, 2).reshape(B * C * 299, H)
    y = matmul(y, Ah)                                          # height pass
    y = y.reshape(B, C, 299, 299)                              # (B, C, W', H')
    return jnp.transpose(y, (0, 3, 2, 1))                      # NHWC (B, H', W', C)


# ---------------------------------------------------------------------------
# synthetic Inception-v3 parameters (deterministic; BN folded; pre-padded bf16)
# ---------------------------------------------------------------------------
_MEAN = np.array([0.485, 0.456, 0.406], np.float32)
_STD = np.array([0.229, 0.224, 0.225], np.float32)


def make_basic_conv(rng, cin, cout, kh, kw, stride=(1, 1), padding=(0, 0),
                    input_scale=None, input_shift=None):
    fan_in = cin * kh * kw
    w = rng.standard_normal((cout, cin, kh, kw), dtype=np.float32) * np.sqrt(2.0 / fan_in)
    gamma = rng.uniform(0.9, 1.1, size=cout).astype(np.float32)
    beta = (rng.standard_normal(cout) * 0.01).astype(np.float32)
    rmean = (rng.standard_normal(cout) * 0.01).astype(np.float32)
    rvar = np.abs(rng.standard_normal(cout) * 0.05 + 1.0).astype(np.float32)
    scale = gamma / np.sqrt(rvar + 1e-3)
    w_f = w * scale[:, None, None, None]
    b_f = beta - rmean * scale
    if input_scale is not None:
        # fold an input-channel affine (x*scale + shift) into the conv
        b_f = b_f + np.einsum('ocij,c->o', w_f, input_shift.astype(np.float32))
        w_f = w_f * input_scale.astype(np.float32)[None, :, None, None]
    # im2col column order is (kh, kw, cin) for NHWC patches
    K, N = kh * kw * cin, cout
    wmat = w_f.transpose(2, 3, 1, 0).reshape(K, N)
    Kp, Np = _round_up(K, 128), _round_up(N, 128)
    wmat_p = np.zeros((Kp, Np), np.float32)
    wmat_p[:K, :N] = wmat
    bias_p = np.zeros((1, Np), np.float32)
    bias_p[0, :N] = b_f
    return {"wmat": jnp.asarray(wmat_p, jnp.bfloat16),
            "bias": jnp.asarray(bias_p, jnp.float32),
            "cout": cout, "kh": kh, "kw": kw,
            "stride": stride, "padding": padding}


def make_inception_a(rng, cin, pool_features):
    return {
        "branch1x1": make_basic_conv(rng, cin, 64, 1, 1),
        "branch5x5_1": make_basic_conv(rng, cin, 48, 1, 1),
        "branch5x5_2": make_basic_conv(rng, 48, 64, 5, 5, padding=(2, 2)),
        "branch3x3dbl_1": make_basic_conv(rng, cin, 64, 1, 1),
        "branch3x3dbl_2": make_basic_conv(rng, 64, 96, 3, 3, padding=(1, 1)),
        "branch3x3dbl_3": make_basic_conv(rng, 96, 96, 3, 3, padding=(1, 1)),
        "branch_pool": make_basic_conv(rng, cin, pool_features, 1, 1),
    }


def apply_inception_a(p, x):
    b1 = apply_basic_conv(p["branch1x1"], x)
    b5 = apply_basic_conv(p["branch5x5_2"], apply_basic_conv(p["branch5x5_1"], x))
    bd = apply_basic_conv(p["branch3x3dbl_1"], x)
    bd = apply_basic_conv(p["branch3x3dbl_2"], bd)
    bd = apply_basic_conv(p["branch3x3dbl_3"], bd)
    bp = apply_basic_conv(p["branch_pool"], pool2d(x, 3, 1, 1, "avg"))
    return jnp.concatenate([b1, b5, bd, bp], axis=-1)


def make_inception_b(rng, cin):
    return {
        "branch3x3": make_basic_conv(rng, cin, 384, 3, 3, stride=(2, 2)),
        "branch3x3dbl_1": make_basic_conv(rng, cin, 64, 1, 1),
        "branch3x3dbl_2": make_basic_conv(rng, 64, 96, 3, 3, padding=(1, 1)),
        "branch3x3dbl_3": make_basic_conv(rng, 96, 96, 3, 3, stride=(2, 2)),
    }


def apply_inception_b(p, x):
    b3 = apply_basic_conv(p["branch3x3"], x)
    bd = apply_basic_conv(p["branch3x3dbl_1"], x)
    bd = apply_basic_conv(p["branch3x3dbl_2"], bd)
    bd = apply_basic_conv(p["branch3x3dbl_3"], bd)
    bp = pool2d(x, 3, 2, 0, "max")
    return jnp.concatenate([b3, bd, bp], axis=-1)


def make_inception_c(rng, cin, c7):
    return {
        "branch1x1": make_basic_conv(rng, cin, 192, 1, 1),
        "branch7x7_1": make_basic_conv(rng, cin, c7, 1, 1),
        "branch7x7_2": make_basic_conv(rng, c7, c7, 1, 7, padding=(0, 3)),
        "branch7x7_3": make_basic_conv(rng, c7, 192, 7, 1, padding=(3, 0)),
        "branch7x7dbl_1": make_basic_conv(rng, cin, c7, 1, 1),
        "branch7x7dbl_2": make_basic_conv(rng, c7, c7, 7, 1, padding=(3, 0)),
        "branch7x7dbl_3": make_basic_conv(rng, c7, c7, 1, 7, padding=(0, 3)),
        "branch7x7dbl_4": make_basic_conv(rng, c7, c7, 7, 1, padding=(3, 0)),
        "branch7x7dbl_5": make_basic_conv(rng, c7, 192, 1, 7, padding=(0, 3)),
        "branch_pool": make_basic_conv(rng, cin, 192, 1, 1),
    }


def apply_inception_c(p, x):
    b1 = apply_basic_conv(p["branch1x1"], x)
    b7 = x
    for n in ("branch7x7_1", "branch7x7_2", "branch7x7_3"):
        b7 = apply_basic_conv(p[n], b7)
    bd = x
    for n in ("branch7x7dbl_1", "branch7x7dbl_2", "branch7x7dbl_3",
              "branch7x7dbl_4", "branch7x7dbl_5"):
        bd = apply_basic_conv(p[n], bd)
    bp = apply_basic_conv(p["branch_pool"], pool2d(x, 3, 1, 1, "avg"))
    return jnp.concatenate([b1, b7, bd, bp], axis=-1)


def make_inception_d(rng, cin):
    return {
        "branch3x3_1": make_basic_conv(rng, cin, 192, 1, 1),
        "branch3x3_2": make_basic_conv(rng, 192, 320, 3, 3, stride=(2, 2)),
        "branch7x7x3_1": make_basic_conv(rng, cin, 192, 1, 1),
        "branch7x7x3_2": make_basic_conv(rng, 192, 192, 1, 7, padding=(0, 3)),
        "branch7x7x3_3": make_basic_conv(rng, 192, 192, 7, 1, padding=(3, 0)),
        "branch7x7x3_4": make_basic_conv(rng, 192, 192, 3, 3, stride=(2, 2)),
    }


def apply_inception_d(p, x):
    b3 = apply_basic_conv(p["branch3x3_2"], apply_basic_conv(p["branch3x3_1"], x))
    b7 = x
    for n in ("branch7x7x3_1", "branch7x7x3_2", "branch7x7x3_3", "branch7x7x3_4"):
        b7 = apply_basic_conv(p[n], b7)
    bp = pool2d(x, 3, 2, 0, "max")
    return jnp.concatenate([b3, b7, bp], axis=-1)


def make_inception_e(rng, cin):
    return {
        "branch1x1": make_basic_conv(rng, cin, 320, 1, 1),
        "branch3x3_1": make_basic_conv(rng, cin, 384, 1, 1),
        "branch3x3_2a": make_basic_conv(rng, 384, 384, 1, 3, padding=(0, 1)),
        "branch3x3_2b": make_basic_conv(rng, 384, 384, 3, 1, padding=(1, 0)),
        "branch3x3dbl_1": make_basic_conv(rng, cin, 448, 1, 1),
        "branch3x3dbl_2": make_basic_conv(rng, 448, 384, 3, 3, padding=(1, 1)),
        "branch3x3dbl_3a": make_basic_conv(rng, 384, 384, 1, 3, padding=(0, 1)),
        "branch3x3dbl_3b": make_basic_conv(rng, 384, 384, 3, 1, padding=(1, 0)),
        "branch_pool": make_basic_conv(rng, cin, 192, 1, 1),
    }


def apply_inception_e(p, x):
    b1 = apply_basic_conv(p["branch1x1"], x)
    b3 = apply_basic_conv(p["branch3x3_1"], x)
    b3 = jnp.concatenate([apply_basic_conv(p["branch3x3_2a"], b3),
                          apply_basic_conv(p["branch3x3_2b"], b3)], axis=-1)
    bd = apply_basic_conv(p["branch3x3dbl_1"], x)
    bd = apply_basic_conv(p["branch3x3dbl_2"], bd)
    bd = jnp.concatenate([apply_basic_conv(p["branch3x3dbl_3a"], bd),
                          apply_basic_conv(p["branch3x3dbl_3b"], bd)], axis=-1)
    bp = apply_basic_conv(p["branch_pool"], pool2d(x, 3, 1, 1, "avg"))
    return jnp.concatenate([b1, b3, bd, bp], axis=-1)


def build_inception_params(seed=1234):
    rng = np.random.default_rng(seed)
    in_scale = 0.5 / _STD                  # folds (x+1)/2 and /std
    in_shift = (0.5 - _MEAN) / _STD        # folds the mean subtraction
    return {
        "Conv2d_1a_3x3": make_basic_conv(rng, 3, 32, 3, 3, stride=(2, 2),
                                         input_scale=in_scale, input_shift=in_shift),
        "Conv2d_2a_3x3": make_basic_conv(rng, 32, 32, 3, 3),
        "Conv2d_2b_3x3": make_basic_conv(rng, 32, 64, 3, 3, padding=(1, 1)),
        "Conv2d_3b_1x1": make_basic_conv(rng, 64, 80, 1, 1),
        "Conv2d_4a_3x3": make_basic_conv(rng, 80, 192, 3, 3),
        "Mixed_5b": make_inception_a(rng, 192, 32),
        "Mixed_5c": make_inception_a(rng, 256, 64),
        "Mixed_5d": make_inception_a(rng, 288, 64),
        "Mixed_6a": make_inception_b(rng, 288),
        "Mixed_6b": make_inception_c(rng, 768, 128),
        "Mixed_6c": make_inception_c(rng, 768, 160),
        "Mixed_6d": make_inception_c(rng, 768, 160),
        "Mixed_6e": make_inception_c(rng, 768, 192),
        "Mixed_7a": make_inception_d(rng, 768),
        "Mixed_7b": make_inception_e(rng, 1280),
        "Mixed_7c": make_inception_e(rng, 2048),
    }


# ---------------------------------------------------------------------------
# WrapInception.forward
# ---------------------------------------------------------------------------
def wrap_inception_forward(params, x):
    x = preprocess(x)                                 # resize -> NHWC bf16; normalization folded into 1a
    x = apply_basic_conv(params["Conv2d_1a_3x3"], x)  # 299 -> 149
    x = apply_basic_conv(params["Conv2d_2a_3x3"], x)  # -> 147
    x = apply_basic_conv(params["Conv2d_2b_3x3"], x)
    x = pool2d(x, 3, 2, 0, "max")                     # -> 73
    x = apply_basic_conv(params["Conv2d_3b_1x1"], x)
    x = apply_basic_conv(params["Conv2d_4a_3x3"], x)  # -> 71
    x = pool2d(x, 3, 2, 0, "max")                     # -> 35
    x = apply_inception_a(params["Mixed_5b"], x)
    x = apply_inception_a(params["Mixed_5c"], x)
    x = apply_inception_a(params["Mixed_5d"], x)
    x = apply_inception_b(params["Mixed_6a"], x)      # -> 17
    x = apply_inception_c(params["Mixed_6b"], x)
    x = apply_inception_c(params["Mixed_6c"], x)
    x = apply_inception_c(params["Mixed_6d"], x)
    x = apply_inception_c(params["Mixed_6e"], x)
    x = apply_inception_d(params["Mixed_7a"], x)      # -> 8
    x = apply_inception_e(params["Mixed_7b"], x)
    x = apply_inception_e(params["Mixed_7c"], x)      # (B, 8, 8, 2048) NHWC
    return global_mean_pool(x)                        # (B, 2048) float32


if __name__ == "__main__":
    key = jax.random.PRNGKey(0)
    # input in [-1, 1] as expected by the wrapper, NCHW like the PyTorch module
    x = jax.random.uniform(key, (2, 3, 16, 16), jnp.float32, minval=-1.0, maxval=1.0)
    params = build_inception_params(seed=1234)
    pool = wrap_inception_forward(params, x)
    pool = jax.block_until_ready(pool)
    assert pool.shape == (2, 2048), pool.shape
    assert pool.dtype == jnp.float32
    assert bool(jnp.all(jnp.isfinite(pool)))
    print("KERNEL_OK")
</pallas_src>

<mosaic_0001>
module attributes {stable_mosaic.version = 11 : i64} {
  func.func @_matmul_kernel(%arg0: i32, %arg1: i32, %arg2: i32, %arg3: memref<128x128xbf16, #tpu.memory_space<vmem>>, %arg4: memref<128x128xbf16, #tpu.memory_space<vmem>>, %arg5: memref<1x128xf32, #tpu.memory_space<vmem>>, %arg6: memref<128x128xbf16, #tpu.memory_space<vmem>>, %arg7: memref<128x128xf32, #tpu.memory_space<vmem>>) attributes {dimension_semantics = [#tpu.dimension_semantics<parallel>, #tpu.dimension_semantics<parallel>, #tpu.dimension_semantics<arbitrary>], iteration_bounds = array<i64: 1, 3, 1>, scalar_prefetch = 0 : i64, scratch_operands = 1 : i64, tpu.core_type = #tpu.core_type<tc>, window_params = [{transform_indices = @transform_0, window_bounds = array<i64: 128, 128>}, {transform_indices = @transform_1, window_bounds = array<i64: 128, 128>}, {transform_indices = @transform_2, window_bounds = array<i64: 1, 128>}, {transform_indices = @transform_3, window_bounds = array<i64: 128, 128>}]} {
    %c0_i32 = arith.constant 0 : i32
    %0 = arith.cmpi eq, %arg2, %c0_i32 : i32
    %1 = arith.extui %0 : i1 to i32
    %c0_i32_0 = arith.constant 0 : i32
    %2 = arith.cmpi ne, %1, %c0_i32_0 : i32
    scf.if %2 {
      %cst_10 = arith.constant 0.000000e+00 : f32
      %12 = vector.broadcast %cst_10 : f32 to vector<128x128xf32>
      %c0_11 = arith.constant 0 : index
      %c0_12 = arith.constant 0 : index
      %13 = vector.load %arg7[%c0_11, %c0_12] : memref<128x128xf32, #tpu.memory_space<vmem>>, vector<128x128xf32>
      tpu.vector_store %arg7[%c0_11, %c0_12], %12 {strides = array<i32>} : memref<128x128xf32, #tpu.memory_space<vmem>>, vector<128x128xf32>,
    } else {
    }
    %c0 = arith.constant 0 : index
    %c0_1 = arith.constant 0 : index
    %3 = vector.load %arg7[%c0, %c0_1] : memref<128x128xf32, #tpu.memory_space<vmem>>, vector<128x128xf32>
    %c0_2 = arith.constant 0 : index
    %c0_3 = arith.constant 0 : index
    %4 = vector.load %arg3[%c0_2, %c0_3] : memref<128x128xbf16, #tpu.memory_space<vmem>>, vector<128x128xbf16>
    %c0_4 = arith.constant 0 : index
    %c0_5 = arith.constant 0 : index
    %5 = vector.load %arg4[%c0_4, %c0_5] : memref<128x128xbf16, #tpu.memory_space<vmem>>, vector<128x128xbf16>
    %cst = arith.constant dense<0.000000e+00> : vector<128x128xf32>
    %6 = tpu.matmul %4, %5, %cst {dimension_numbers = #tpu.dot_dimension_numbers<[1], [0], [0], [1], [0, 0, 1, 1], [], []>} : vector<128x128xbf16>, vector<128x128xbf16>, vector<128x128xf32> -> vector<128x128xf32>
    %7 = arith.addf %3, %6 : vector<128x128xf32>
    %c0_6 = arith.constant 0 : index
    %c0_7 = arith.constant 0 : index
    %8 = vector.load %arg7[%c0_6, %c0_7] : memref<128x128xf32, #tpu.memory_space<vmem>>, vector<128x128xf32>
    tpu.vector_store %arg7[%c0_6, %c0_7], %7 {strides = array<i32>} : memref<128x128xf32, #tpu.memory_space<vmem>>, vector<128x128xf32>,
    %c0_i32_8 = arith.constant 0 : i32
    %9 = arith.cmpi eq, %arg2, %c0_i32_8 : i32
    %10 = arith.extui %9 : i1 to i32
    %c0_i32_9 = arith.constant 0 : i32
    %11 = arith.cmpi ne, %10, %c0_i32_9 : i32
    scf.if %11 {
      %c0_10 = arith.constant 0 : index
      %c0_11 = arith.constant 0 : index
      %12 = vector.load %arg7[%c0_10, %c0_11] : memref<128x128xf32, #tpu.memory_space<vmem>>, vector<128x128xf32>
      %c0_12 = arith.constant 0 : index
      %c0_13 = arith.constant 0 : index
      %13 = vector.load %arg5[%c0_12, %c0_13] : memref<1x128xf32, #tpu.memory_space<vmem>>, vector<1x128xf32>
      %14 = vector.broadcast %13 : vector<1x128xf32> to vector<128x128xf32>
      %15 = arith.addf %12, %14 : vector<128x128xf32>
      %16 = arith.truncf %15 : vector<128x128xf32> to vector<128x128xbf16>
      %c0_14 = arith.constant 0 : index
      %c0_15 = arith.constant 0 : index
      %17 = vector.load %arg6[%c0_14, %c0_15] : memref<128x128xbf16, #tpu.memory_space<vmem>>, vector<128x128xbf16>
      tpu.vector_store %arg6[%c0_14, %c0_15], %16 {strides = array<i32>} : memref<128x128xbf16, #tpu.memory_space<vmem>>, vector<128x128xbf16>,
    } else {
    }
    return
  }
  func.func @transform_0(%arg0: i32, %arg1: i32, %arg2: i32) -> (i32, i32) {
    %c0_i32 = arith.constant 0 : i32
    return %arg0, %arg2 : i32, i32
  }
  func.func @transform_1(%arg0: i32, %arg1: i32, %arg2: i32) -> (i32, i32) {
    %c0_i32 = arith.constant 0 : i32
    return %arg2, %arg1 : i32, i32
  }
  func.func @transform_2(%arg0: i32, %arg1: i32, %arg2: i32) -> (i32, i32) {
    %c0_i32 = arith.constant 0 : i32
    %c0_i32_0 = arith.constant 0 : i32
    return %c0_i32, %arg1 : i32, i32
  }
  func.func @transform_3(%arg0: i32, %arg1: i32, %arg2: i32) -> (i32, i32) {
    %c0_i32 = arith.constant 0 : i32
    return %arg0, %arg1 : i32, i32
  }
}

</mosaic_0001>

<llo_original>
// kernel: _matmul_padded.1
$region0: #{_matmul_padded.1}
  #allocation0 [shape = 'u32[]', space=smem, size = 0x4, offset = 0x4, fixed_abs, tag = 'smem constant byte address 0x4 - core index']
  #allocation1 [shape = 'u32[144,128]{1,0:T(1,128)}', space=vmem, size = 0x12000, scoped, tag = 'internal scratch']
  #allocation2 [shape = 'f32[128,128]{1,0:T(8,128)}', space=vmem, size = 0x10000, scoped, tag = 'scratch operand']
  %s0 = inlined_call_operand.hbm [shape: bf16[128,128], index: 0, kind: input, shape index: {}]
  %s1 = inlined_call_operand.hbm [shape: bf16[128,384], index: 1, kind: input, shape index: {}]
  %s2 = inlined_call_operand.vmem [shape: f32[1,384], index: 2, kind: input, shape index: {}]
  %s3 = inlined_call_operand.hbm [shape: bf16[128,384], index: 3, kind: output, shape index: {}]
  %s4 = sld [smem:[#allocation0]]
  $region61: #{_matmul_padded.1} parent=0
    _
  %s6 = ssub.s32 1, %s4
  %s7 = scalar_select 0, %s6, %s4
  $region1: #{_matmul_padded.1} parent=0
    #allocation3 [shape = 'u8[32768]{0}', space=vmem, size = 0x8000, scoped, tag = 'input window, operand 0, single buffered']
    #allocation4 [shape = 's32[2]{0}', space=sflag, size = 0x8, scoped, tag = 'scoped memory for _matmul_padded.1']
    #allocation5 [shape = 's32[2]{0}', space=sflag, size = 0x8, scoped, tag = 'scoped memory for _matmul_padded.1']
    #allocation6 [shape = 'u8[65536]{0}', space=vmem, size = 0x10000, scoped, tag = 'input window, operand 1']
    #allocation7 [shape = 's32[2]{0}', space=sflag, size = 0x8, scoped, tag = 'scoped memory for _matmul_padded.1']
    #allocation8 [shape = 'u8[65536]{0}', space=vmem, size = 0x10000, scoped, tag = 'output window, operand 0']
    %8 = vsyncpa [#allocation4], 0
    %9 = vsyncpa [#allocation7], 0
    %s10 = scalar_lea.sflag [#allocation7], 1
    %11 = vsyncpa %s10, 0
    %12 = vsyncpa [#allocation5], 0
    %s13 = scalar_lea.sflag [#allocation5], 1
    %14 = vsyncpa %s13, 0
    loop: start=0, step=1, limit=5
    $region2: #{_matmul_padded.1} parent=1 // loop_pre_header
      _
    $region3: #{_matmul_padded.1} parent=1 // loop_header
      %s16 = sphi 0, %s20
      %p17 = scmp.ge.s32.totalorder %s16, 5
      %s23 = sphi 0, %s42
      %s24 = sphi 0, %s38
      %s25 = sphi 0, %s34
      %s26 = sphi 0, %s23
      %s27 = sphi 0, %s24
      %s28 = sphi 0, %s25
      %s29 = sphi 0, %s26
      %s30 = sphi 0, %s27
      %s31 = sphi 0, %s28
      %s47 = sphi 0, %s49
      %s50 = sphi 0, %s47
      %s51 = sphi 0, %s50
      %s67 = sphi 0, %s51
      %s75 = sphi 0, %s77
      %s78 = sphi 0, %s75
      %s79 = sphi 0, %s78
      %s95 = sphi 0, %s79
      %s101 = sphi 0, %s103
      %s104 = sphi 0, %s101
      %s105 = sphi 0, %s104
      %s121 = sphi 0, %s105
      %s129 = sphi 0, %s131
      %s132 = sphi 0, %s129
      %s133 = sphi 0, %s132
      %s149 = sphi 0, %s133
    $region4: #{_matmul_padded.1} parent=1 // loop_header_branch
      %19 = sbr.rel (%p17) target = $region8
    $region5: #{_matmul_padded.1} parent=1 // loop_body
      %s21 = ssub.s32 %s16, 1
      %s22 = ssub.s32 %s16, 2
      %s32 = sadd.s32 1, %s25
      %p33 = scmp.ge.s32.totalorder %s32, 1
      %s34 = scalar_select %p33, 0, %s32
      %s35 = sadd.s32 1, %s24
      %s36 = scalar_select %p33, %s35, %s24
      %p37 = scmp.ge.s32.totalorder %s36, 3
      %s38 = scalar_select %p37, 0, %s36
      %s39 = sadd.s32 1, %s23
      %s40 = scalar_select %p37, %s39, %s23
      %p41 = scmp.ge.s32.totalorder %s40, 1
      %s42 = scalar_select %p41, 0, %s40
      %s43 = ssub.s32 %s23, %s42
      %s44 = ssub.s32 %s25, %s34
      %s45 = sor.u32 %s43, %s44
      %p46 = scmp.eq.s32.totalorder %s45, 0
      %s48 = sadd.s32 %s47, 1
      %s49 = scalar_select %p46, %s47, %s48
      %p52 = pneg %p46
      %p53 = scmp.eq.s32.totalorder %s16, 2
      %p54 = por %p52, %p53
      %p55 = scmp.ne.s32.totalorder %s47, %s50
      %p56 = scmp.eq.s32.totalorder %s16, 0
      %p57 = por %p55, %p56
      %p58 = scmp.ne.s32.totalorder %s47, %s50
      %p59 = scmp.eq.s32.totalorder %s21, 2
      %p60 = por %p58, %p59
      %p61 = scmp.ne.s32.totalorder %s50, %s51
      %p62 = scmp.eq.s32.totalorder %s21, 0
      %p63 = por %p61, %p62
      %p64 = scmp.ne.s32.totalorder %s50, %s51
      %p65 = scmp.eq.s32.totalorder %s22, 2
      %p66 = por %p64, %p65
      %p68 = scmp.ne.s32.totalorder %s51, %s67
      %p69 = scmp.eq.s32.totalorder %s22, 0
      %p70 = por %p68, %p69
      %s71 = ssub.s32 %s25, %s34
      %s72 = ssub.s32 %s24, %s38
      %s73 = sor.u32 %s71, %s72
      %p74 = scmp.eq.s32.totalorder %s73, 0
      %s76 = sadd.s32 %s75, 1
      %s77 = scalar_select %p74, %s75, %s76
      %p80 = pneg %p74
      %p81 = scmp.eq.s32.totalorder %s16, 2
      %p82 = por %p80, %p81
      %p83 = scmp.ne.s32.totalorder %s75, %s78
      %p84 = scmp.eq.s32.totalorder %s16, 0
      %p85 = por %p83, %p84
      %p86 = scmp.ne.s32.totalorder %s75, %s78
      %p87 = scmp.eq.s32.totalorder %s21, 2
      %p88 = por %p86, %p87
      %p89 = scmp.ne.s32.totalorder %s78, %s79
      %p90 = scmp.eq.s32.totalorder %s21, 0
      %p91 = por %p89, %p90
      %p92 = scmp.ne.s32.totalorder %s78, %s79
      %p93 = scmp.eq.s32.totalorder %s22, 2
      %p94 = por %p92, %p93
      %p96 = scmp.ne.s32.totalorder %s79, %s95
      %p97 = scmp.eq.s32.totalorder %s22, 0
      %p98 = por %p96, %p97
      %s99 = ssub.s32 %s24, %s38
      %p100 = scmp.eq.s32.totalorder %s99, 0
      %s102 = sadd.s32 %s101, 1
      %s103 = scalar_select %p100, %s101, %s102
      %p106 = pneg %p100
      %p107 = scmp.eq.s32.totalorder %s16, 2
      %p108 = por %p106, %p107
      %p109 = scmp.ne.s32.totalorder %s101, %s104
      %p110 = scmp.eq.s32.totalorder %s16, 0
      %p111 = por %p109, %p110
      %p112 = scmp.ne.s32.totalorder %s101, %s104
      %p113 = scmp.eq.s32.totalorder %s21, 2
      %p114 = por %p112, %p113
      %p115 = scmp.ne.s32.totalorder %s104, %s105
      %p116 = scmp.eq.s32.totalorder %s21, 0
      %p117 = por %p115, %p116
      %p118 = scmp.ne.s32.totalorder %s104, %s105
      %p119 = scmp.eq.s32.totalorder %s22, 2
      %p120 = por %p118, %p119
      %p122 = scmp.ne.s32.totalorder %s105, %s121
      %p123 = scmp.eq.s32.totalorder %s22, 0
      %p124 = por %p122, %p123
      %s125 = ssub.s32 %s23, %s42
      %s126 = ssub.s32 %s24, %s38
      %s127 = sor.u32 %s125, %s126
      %p128 = scmp.eq.s32.totalorder %s127, 0
      %s130 = sadd.s32 %s129, 1
      %s131 = scalar_select %p128, %s129, %s130
      %p134 = pneg %p128
      %p135 = scmp.eq.s32.totalorder %s16, 2
      %p136 = por %p134, %p135
      %p137 = scmp.ne.s32.totalorder %s129, %s132
      %p138 = scmp.eq.s32.totalorder %s16, 0
      %p139 = por %p137, %p138
      %p140 = scmp.ne.s32.totalorder %s129, %s132
      %p141 = scmp.eq.s32.totalorder %s21, 2
      %p142 = por %p140, %p141
      %p143 = scmp.ne.s32.totalorder %s132, %s133
      %p144 = scmp.eq.s32.totalorder %s21, 0
      %p145 = por %p143, %p144
      %p146 = scmp.ne.s32.totalorder %s132, %s133
      %p147 = scmp.eq.s32.totalorder %s22, 2
      %p148 = por %p146, %p147
      %p150 = scmp.ne.s32.totalorder %s133, %s149
      %p151 = scmp.eq.s32.totalorder %s22, 0
      %p152 = por %p150, %p151
      %p153 = scmp.le.s32.totalorder 1, %s16
      %p154 = scmp.lt.s32.totalorder %s16, 4
      %p155 = pnand %p153, %p154
      %p156 = pneg %p155
      // Predicated region
      $region9: #{_matmul_padded.1} parent=5 // pred_check
        _
      $region10: #{_matmul_padded.1} parent=5 // pred_check_branch
        %158 = sbr.rel (%p155) target = $region12
      $region11: #{_matmul_padded.1} parent=5 // pred_region
        %s159 = ssub.s32 %s16, 1
        // Predicated region
        $region13: #{_matmul_padded.1} parent=11 // pred_check
          %p160 = pneg %p63
        $region14: #{_matmul_padded.1} parent=11 // pred_check_branch
          %162 = sbr.rel (%p160) target = $region16
        $region15: #{_matmul_padded.1} parent=11 // pred_region
          %s163 = smul.u32 16, %s26
          %s165 = ssub.s32 1024, 1024
          %166 = vsyncadd [#allocation4], %s165
          %s167 = sadd.s32 %s28, %s163
          %s168 = smul.addr %s167, 64
          %s169 = scalar_lea.hbm %s0, %s168
          %s170 = sshll.u32 [#allocation3], 4
          %s171 = int_to_ptr.vmem [resolvable:$true] %s170
          %176 = dma.hbm_to_vmem [thread:$0]  %s169, 1024, %s171, [#allocation4], 64, 64, 4
        $region16: #{_matmul_padded.1} parent=11 // pred_fallthru
          _
      $region12: #{_matmul_padded.1} parent=5 // pred_fallthru
        _
      %p177 = scmp.lt.s32.totalorder %s16, 3
      // Predicated region
      $region17: #{_matmul_padded.1} parent=5 // pred_check
        %p178 = pneg %p177
      $region18: #{_matmul_padded.1} parent=5 // pred_check_branch
        %180 = sbr.rel (%p178) target = $region20
      $region19: #{_matmul_padded.1} parent=5 // pred_region
        // Predicated region
        $region21: #{_matmul_padded.1} parent=19 // pred_check
          %p181 = pneg %p85
        $region22: #{_matmul_padded.1} parent=19 // pred_check_branch
          %183 = sbr.rel (%p181) target = $region24
        $region23: #{_matmul_padded.1} parent=19 // pred_region
          %s184 = sand.u32 %s75, 1
          %s185 = scalar_lea.sflag [#allocation7], %s184
          %s186 = sand.u32 %s75, 1
          %s187 = smul.addr %s186, 64
          %s188 = scalar_lea.vmem [#allocation6], %s187
          %s189 = smul.u32 16, %s25
          %s191 = ssub.s32 1024, 1024
          %192 = vsyncadd %s185, %s191
          %s193 = smul.addr %s189, 3
          %s194 = sadd.s32 %s24, %s193
          %s195 = smul.addr %s194, 64
          %s196 = scalar_lea.hbm %s1, %s195
          %s197 = sshll.u32 %s188, 4
          %s198 = int_to_ptr.vmem [resolvable:$true] %s197
          %203 = dma.hbm_to_vmem [thread:$0]  %s196, 1024, %s198, %s185, 192, 64, 4
        $region24: #{_matmul_padded.1} parent=19 // pred_fallthru
          _
        // Predicated region
        $region25: #{_matmul_padded.1} parent=19 // pred_check
          %p204 = pneg %p111
        $region26: #{_matmul_padded.1} parent=19 // pred_check_branch
          %206 = sbr.rel (%p204) target = $region28
        $region27: #{_matmul_padded.1} parent=19 // pred_region
          %p207 = scmp.lt.s32.totalorder %s24, 2
          %s208 = scalar_select %p207, %s24, 2
          %s209 = scalar_lea.vmem %s2, %s208
        $region28: #{_matmul_padded.1} parent=19 // pred_fallthru
          _
      $region20: #{_matmul_padded.1} parent=5 // pred_fallthru
        _
      %p210 = scmp.le.s32.totalorder 1, %s16
      %p211 = scmp.lt.s32.totalorder %s16, 4
      %p212 = pnand %p210, %p211
      %p213 = pneg %p212
      // Predicated region
      $region29: #{_matmul_padded.1} parent=5 // pred_check
        _
      $region30: #{_matmul_padded.1} parent=5 // pred_check_branch
        %215 = sbr.rel (%p212) target = $region32
      $region31: #{_matmul_padded.1} parent=5 // pred_region
        %s216 = ssub.s32 %s16, 1
        // Predicated region
        $region33: #{_matmul_padded.1} parent=31 // pred_check
          %p217 = pneg %p63
        $region34: #{_matmul_padded.1} parent=31 // pred_check_branch
          %219 = sbr.rel (%p217) target = $region36
        $region35: #{_matmul_padded.1} parent=31 // pred_region
          %220 = dma.done [#allocation4], 1024
        $region36: #{_matmul_padded.1} parent=31 // pred_fallthru
          _
        %s221 = sand.u32 %s78, 1
        %s222 = scalar_lea.sflag [#allocation7], %s221
        %s223 = sand.u32 %s78, 1
        %s224 = smul.addr %s223, 64
        %s225 = scalar_lea.vmem [#allocation6], %s224
        // Predicated region
        $region37: #{_matmul_padded.1} parent=31 // pred_check
          %p226 = pneg %p91
        $region38: #{_matmul_padded.1} parent=31 // pred_check_branch
          %228 = sbr.rel (%p226) target = $region40
        $region39: #{_matmul_padded.1} parent=31 // pred_region
          %229 = dma.done %s222, 1024
        $region40: #{_matmul_padded.1} parent=31 // pred_fallthru
          _
        %p230 = pneg %p63
        %p231 = pneg %p60
        %s232 = sand.u32 %s78, 1
        %s233 = scalar_lea.sflag [#allocation7], %s232
        %s234 = sand.u32 %s78, 1
        %s235 = smul.addr %s234, 64
        %s236 = scalar_lea.vmem [#allocation6], %s235
        %p237 = pneg %p91
        %p238 = pneg %p88
        %p239 = scmp.lt.s32.totalorder %s27, 2
        %s240 = scalar_select %p239, %s27, 2
        %s241 = scalar_lea.vmem %s2, %s240
        %p242 = pneg %p117
        %p243 = pneg %p114
        %p244 = pneg %p145
        %p245 = pneg %p142
        %s246 = sand.u32 %s132, 1
        %s247 = scalar_lea.sflag [#allocation5], %s246
        %s248 = sand.u32 %s132, 1
        %s249 = smul.addr %s248, 64
        %s250 = scalar_lea.vmem [#allocation8], %s249
        %s251 = smul.u32 16, %s26
        %s252 = smul.u32 16, %s28
        %p253 = scmp.lt.s32.totalorder %s27, 2
        %s254 = scalar_select %p253, %s27, 2
        %s255 = scalar_lea.vmem %s2, %s254
        %s256 = smul.u32 16, %s26
        %p258 = scmp.eq.s32.totalorder %s28, 0
        // Predicated region
        $region41: #{_matmul_padded.1} parent=31 // pred_check
          %p259 = pneg %p258
        $region42: #{_matmul_padded.1} parent=31 // pred_check_branch
          %261 = sbr.rel (%p259) target = $region44
        $region43: #{_matmul_padded.1} parent=31 // pred_region
          %262 = vst [vmem:[#allocation2] sm:$0xff] 0.0
          %263 = vst [vmem:[#allocation2 + $0x8] sm:$0xff] 0.0
          %264 = vst [vmem:[#allocation2 + $0x10] sm:$0xff] 0.0
          %265 = vst [vmem:[#allocation2 + $0x18] sm:$0xff] 0.0
          %266 = vst [vmem:[#allocation2 + $0x20] sm:$0xff] 0.0
          %267 = vst [vmem:[#allocation2 + $0x28] sm:$0xff] 0.0
          %268 = vst [vmem:[#allocation2 + $0x30] sm:$0xff] 0.0
          %269 = vst [vmem:[#allocation2 + $0x38] sm:$0xff] 0.0
          %270 = vst [vmem:[#allocation2 + $0x40] sm:$0xff] 0.0
          %271 = vst [vmem:[#allocation2 + $0x48] sm:$0xff] 0.0
          %272 = vst [vmem:[#allocation2 + $0x50] sm:$0xff] 0.0
          %273 = vst [vmem:[#allocation2 + $0x58] sm:$0xff] 0.0
          %274 = vst [vmem:[#allocation2 + $0x60] sm:$0xff] 0.0
          %275 = vst [vmem:[#allocation2 + $0x68] sm:$0xff] 0.0
          %276 = vst [vmem:[#allocation2 + $0x70] sm:$0xff] 0.0
          %277 = vst [vmem:[#allocation2 + $0x78] sm:$0xff] 0.0
        $region44: #{_matmul_padded.1} parent=31 // pred_fallthru
          _
        %v278 = vld [vmem:[#allocation2] sm:$0xff]
        %v279 = vld [vmem:[#allocation2 + $0x8] sm:$0xff]
        %v280 = vld [vmem:[#allocation2 + $0x10] sm:$0xff]
        %v281 = vld [vmem:[#allocation2 + $0x18] sm:$0xff]
        %v282 = vld [vmem:[#allocation2 + $0x20] sm:$0xff]
        %v283 = vld [vmem:[#allocation2 + $0x28] sm:$0xff]
        %v284 = vld [vmem:[#allocation2 + $0x30] sm:$0xff]
        %v285 = vld [vmem:[#allocation2 + $0x38] sm:$0xff]
        %v286 = vld [vmem:[#allocation2 + $0x40] sm:$0xff]
        %v287 = vld [vmem:[#allocation2 + $0x48] sm:$0xff]
        %v288 = vld [vmem:[#allocation2 + $0x50] sm:$0xff]
        %v289 = vld [vmem:[#allocation2 + $0x58] sm:$0xff]
        %v290 = vld [vmem:[#allocation2 + $0x60] sm:$0xff]
        %v291 = vld [vmem:[#allocation2 + $0x68] sm:$0xff]
        %v292 = vld [vmem:[#allocation2 + $0x70] sm:$0xff]
        %v293 = vld [vmem:[#allocation2 + $0x78] sm:$0xff]
        %v294 = vld [vmem:[#allocation3] sm:$0xf]
        %v295 = vld [vmem:[#allocation3 + $0x4] sm:$0xf]
        %v296 = vld [vmem:[#allocation3 + $0x8] sm:$0xf]
        %v297 = vld [vmem:[#allocation3 + $0xc] sm:$0xf]
        %v298 = vld [vmem:[#allocation3 + $0x10] sm:$0xf]
        %v299 = vld [vmem:[#allocation3 + $0x14] sm:$0xf]
        %v300 = vld [vmem:[#allocation3 + $0x18] sm:$0xf]
        %v301 = vld [vmem:[#allocation3 + $0x1c] sm:$0xf]
        %v302 = vld [vmem:[#allocation3 + $0x20] sm:$0xf]
        %v303 = vld [vmem:[#allocation3 + $0x24] sm:$0xf]
        %v304 = vld [vmem:[#allocation3 + $0x28] sm:$0xf]
        %v305 = vld [vmem:[#allocation3 + $0x2c] sm:$0xf]
        %v306 = vld [vmem:[#allocation3 + $0x30] sm:$0xf]
        %v307 = vld [vmem:[#allocation3 + $0x34] sm:$0xf]
        %v308 = vld [vmem:[#allocation3 + $0x38] sm:$0xf]
        %v309 = vld [vmem:[#allocation3 + $0x3c] sm:$0xf]
        %v310 = vld [vmem:[%s225] sm:$0xf]
        %v311 = vld [vmem:[%s225 + $0x4] sm:$0xf]
        %v312 = vld [vmem:[%s225 + $0x8] sm:$0xf]
        %v313 = vld [vmem:[%s225 + $0xc] sm:$0xf]
        %v314 = vld [vmem:[%s225 + $0x10] sm:$0xf]
        %v315 = vld [vmem:[%s225 + $0x14] sm:$0xf]
        %v316 = vld [vmem:[%s225 + $0x18] sm:$0xf]
        %v317 = vld [vmem:[%s225 + $0x1c] sm:$0xf]
        %v318 = vld [vmem:[%s225 + $0x20] sm:$0xf]
        %v319 = vld [vmem:[%s225 + $0x24] sm:$0xf]
        %v320 = vld [vmem:[%s225 + $0x28] sm:$0xf]
        %v321 = vld [vmem:[%s225 + $0x2c] sm:$0xf]
        %v322 = vld [vmem:[%s225 + $0x30] sm:$0xf]
        %v323 = vld [vmem:[%s225 + $0x34] sm:$0xf]
        %v324 = vld [vmem:[%s225 + $0x38] sm:$0xf]
        %v325 = vld [vmem:[%s225 + $0x3c] sm:$0xf]
        %v342 = vunpack.c.l.b16 %v294
        %v343 = vunpack.c.l.b16 %v295
        %v344 = vunpack.c.l.b16 %v296
        %v345 = vunpack.c.l.b16 %v297
        %v346 = vunpack.c.l.b16 %v298
        %v347 = vunpack.c.l.b16 %v299
        %v348 = vunpack.c.l.b16 %v300
        %v349 = vunpack.c.l.b16 %v301
        %v350 = vunpack.c.l.b16 %v302
        %v351 = vunpack.c.l.b16 %v303
        %v352 = vunpack.c.l.b16 %v304
        %v353 = vunpack.c.l.b16 %v305
        %v354 = vunpack.c.l.b16 %v306
        %v355 = vunpack.c.l.b16 %v307
        %v356 = vunpack.c.l.b16 %v308
        %v357 = vunpack.c.l.b16 %v309
        %v358 = vpack.c.b16 %v343, %v342
        %v359 = vpack.c.b16 %v345, %v344
        %v360 = vpack.c.b16 %v347, %v346
        %v361 = vpack.c.b16 %v349, %v348
        %v362 = vpack.c.b16 %v351, %v350
        %v363 = vpack.c.b16 %v353, %v352
        %v364 = vpack.c.b16 %v355, %v354
        %v365 = vpack.c.b16 %v357, %v356
        %v390 = vunpack.c.l.b16 %v310
        %v391 = vunpack.c.l.b16 %v311
        %v392 = vunpack.c.l.b16 %v312
        %v393 = vunpack.c.l.b16 %v313
        %v394 = vunpack.c.l.b16 %v314
        %v395 = vunpack.c.l.b16 %v315
        %v396 = vunpack.c.l.b16 %v316
        %v397 = vunpack.c.l.b16 %v317
        %v398 = vunpack.c.l.b16 %v318
        %v399 = vunpack.c.l.b16 %v319
        %v400 = vunpack.c.l.b16 %v320
        %v401 = vunpack.c.l.b16 %v321
        %v402 = vunpack.c.l.b16 %v322
        %v403 = vunpack.c.l.b16 %v323
        %v404 = vunpack.c.l.b16 %v324
        %v405 = vunpack.c.l.b16 %v325
        %v406 = vpack.c.b16 %v391, %v390
        %v407 = vpack.c.b16 %v393, %v392
        %v408 = vpack.c.b16 %v395, %v394
        %v409 = vpack.c.b16 %v397, %v396
        %v410 = vpack.c.b16 %v399, %v398
        %v411 = vpack.c.b16 %v401, %v400
        %v412 = vpack.c.b16 %v403, %v402
        %v413 = vpack.c.b16 %v405, %v404
        %422 = vmatprep.subr.bf16.mxu0 0
        %423 = vmatpush1.bf16.msra.mxu0 %v413
        %424 = vmatprep.subr.bf16.mxu0 0
        %425 = vmatpush1.bf16.msra.mxu0 %v412
        %426 = vmatprep.subr.bf16.mxu0 0
        %427 = vmatpush1.bf16.msra.mxu0 %v411
        %428 = vmatprep.subr.bf16.mxu0 0
        %429 = vmatpush1.bf16.msra.mxu0 %v410
        %430 = vmatprep.subr.bf16.mxu0 0
        %431 = vmatpush1.bf16.msra.mxu0 %v409
        %432 = vmatprep.subr.bf16.mxu0 0
        %433 = vmatpush1.bf16.msra.mxu0 %v408
        %434 = vmatprep.subr.bf16.mxu0 0
        %435 = vmatpush1.bf16.msra.mxu0 %v407
        %436 = vmatprep.subr.bf16.mxu0 0
        %437 = vmatpush1.bf16.msra.mxu0 %v406
        %438 = vmatprep.subr.bf16.mxu0 0
        %439 = vmatpush2.bf16.msra.mxu0 0
        %440 = vmatprep.subr.bf16.mxu0 0
        %441 = vmatpush2.bf16.msra.mxu0 0
        %442 = vmatprep.subr.bf16.mxu0 0
        %443 = vmatpush2.bf16.msra.mxu0 0
        %444 = vmatprep.subr.bf16.mxu0 0
        %445 = vmatpush2.bf16.msra.mxu0 0
        %446 = vmatprep.subr.bf16.mxu0 0
        %447 = vmatpush2.bf16.msra.mxu0 0
        %448 = vmatprep.subr.bf16.mxu0 0
        %449 = vmatpush2.bf16.msra.mxu0 0
        %450 = vmatprep.subr.bf16.mxu0 0
        %451 = vmatpush2.bf16.msra.mxu0 0
        %452 = vmatprep.subr.bf16.mxu0 0
        %453 = vmatpush2.bf16.msra.mxu0 0
        %454 = vmatprep.mubr.bf16.mxu0 0
        %455 = vmatmul.mubr.bf16.gmra.mxu0 %v358
        %v456 = vpop.f32.mrf.mxu0
        %v457 = vadd.f32 0.0, %v456
        %v458 = vpop.f32.mrf.mxu0
        %v459 = vpop.f32.mrf.mxu0
        %v460 = vadd.f32 0.0, %v459
        %v461 = vpop.f32.mrf.mxu0
        %462 = vmatprep.mubr.bf16.mxu0 0
        %463 = vmatmul.mubr.bf16.gmra.mxu0 %v359
        %v464 = vpop.f32.mrf.mxu0
        %v465 = vadd.f32 0.0, %v464
        %v466 = vpop.f32.mrf.mxu0
        %v467 = vpop.f32.mrf.mxu0
        %v468 = vadd.f32 0.0, %v467
        %v469 = vpop.f32.mrf.mxu0
        %470 = vmatprep.mubr.bf16.mxu0 0
        %471 = vmatmul.mubr.bf16.gmra.mxu0 %v360
        %v472 = vpop.f32.mrf.mxu0
        %v473 = vadd.f32 0.0, %v472
        %v474 = vpop.f32.mrf.mxu0
        %v475 = vpop.f32.mrf.mxu0
        %v476 = vadd.f32 0.0, %v475
        %v477 = vpop.f32.mrf.mxu0
        %478 = vmatprep.mubr.bf16.mxu0 0
        %479 = vmatmul.mubr.bf16.gmra.mxu0 %v361
        %v480 = vpop.f32.mrf.mxu0
        %v481 = vadd.f32 0.0, %v480
        %v482 = vpop.f32.mrf.mxu0
        %v483 = vpop.f32.mrf.mxu0
        %v484 = vadd.f32 0.0, %v483
        %v485 = vpop.f32.mrf.mxu0
        %486 = vmatprep.mubr.bf16.mxu0 0
        %487 = vmatmul.mubr.bf16.gmra.mxu0 %v362
        %v488 = vpop.f32.mrf.mxu0
        %v489 = vadd.f32 0.0, %v488
        %v490 = vpop.f32.mrf.mxu0
        %v491 = vpop.f32.mrf.mxu0
        %v492 = vadd.f32 0.0, %v491
        %v493 = vpop.f32.mrf.mxu0
        %494 = vmatprep.mubr.bf16.mxu0 0
        %495 = vmatmul.mubr.bf16.gmra.mxu0 %v363
        %v496 = vpop.f32.mrf.mxu0
        %v497 = vadd.f32 0.0, %v496
        %v498 = vpop.f32.mrf.mxu0
        %v499 = vpop.f32.mrf.mxu0
        %v500 = vadd.f32 0.0, %v499
        %v501 = vpop.f32.mrf.mxu0
        %502 = vmatprep.mubr.bf16.mxu0 0
        %503 = vmatmul.mubr.bf16.gmra.mxu0 %v364
        %v504 = vpop.f32.mrf.mxu0
        %v505 = vadd.f32 0.0, %v504
        %v506 = vpop.f32.mrf.mxu0
        %v507 = vpop.f32.mrf.mxu0
        %v508 = vadd.f32 0.0, %v507
        %v509 = vpop.f32.mrf.mxu0
        %510 = vmatprep.mubr.bf16.mxu0 0
        %511 = vmatmul.mubr.bf16.gmra.mxu0 %v365
        %v512 = vpop.f32.mrf.mxu0
        %v513 = vadd.f32 0.0, %v512
        %v514 = vpop.f32.mrf.mxu0
        %v515 = vpop.f32.mrf.mxu0
        %v516 = vadd.f32 0.0, %v515
        %v517 = vpop.f32.mrf.mxu0
        %518 = vdwg.mxu0
        %v519 = vadd.f32 %v278, %v457
        %v520 = vadd.f32 %v279, %v460
        %v521 = vadd.f32 %v280, %v465
        %v522 = vadd.f32 %v281, %v468
        %v523 = vadd.f32 %v282, %v473
        %v524 = vadd.f32 %v283, %v476
        %v525 = vadd.f32 %v284, %v481
        %v526 = vadd.f32 %v285, %v484
        %v527 = vadd.f32 %v286, %v489
        %v528 = vadd.f32 %v287, %v492
        %v529 = vadd.f32 %v288, %v497
        %v530 = vadd.f32 %v289, %v500
        %v531 = vadd.f32 %v290, %v505
        %v532 = vadd.f32 %v291, %v508
        %v533 = vadd.f32 %v292, %v513
        %v534 = vadd.f32 %v293, %v516
        %535 = vst [vmem:[#allocation2] sm:$0xff] %v519
        %536 = vst [vmem:[#allocation2 + $0x8] sm:$0xff] %v520
        %537 = vst [vmem:[#allocation2 + $0x10] sm:$0xff] %v521
        %538 = vst [vmem:[#allocation2 + $0x18] sm:$0xff] %v522
        %539 = vst [vmem:[#allocation2 + $0x20] sm:$0xff] %v523
        %540 = vst [vmem:[#allocation2 + $0x28] sm:$0xff] %v524
        %541 = vst [vmem:[#allocation2 + $0x30] sm:$0xff] %v525
        %542 = vst [vmem:[#allocation2 + $0x38] sm:$0xff] %v526
        %543 = vst [vmem:[#allocation2 + $0x40] sm:$0xff] %v527
        %544 = vst [vmem:[#allocation2 + $0x48] sm:$0xff] %v528
        %545 = vst [vmem:[#allocation2 + $0x50] sm:$0xff] %v529
        %546 = vst [vmem:[#allocation2 + $0x58] sm:$0xff] %v530
        %547 = vst [vmem:[#allocation2 + $0x60] sm:$0xff] %v531
        %548 = vst [vmem:[#allocation2 + $0x68] sm:$0xff] %v532
        %549 = vst [vmem:[#allocation2 + $0x70] sm:$0xff] %v533
        %550 = vst [vmem:[#allocation2 + $0x78] sm:$0xff] %v534
        // Predicated region
        $region45: #{_matmul_padded.1} parent=31 // pred_check
          %p551 = pneg %p258
        $region46: #{_matmul_padded.1} parent=31 // pred_check_branch
          %553 = sbr.rel (%p551) target = $region48
        $region47: #{_matmul_padded.1} parent=31 // pred_region
          %v554 = vld [vmem:[#allocation2] sm:$0xff]
          %v555 = vld [vmem:[#allocation2 + $0x8] sm:$0xff]
          %v556 = vld [vmem:[#allocation2 + $0x10] sm:$0xff]
          %v557 = vld [vmem:[#allocation2 + $0x18] sm:$0xff]
          %v558 = vld [vmem:[#allocation2 + $0x20] sm:$0xff]
          %v559 = vld [vmem:[#allocation2 + $0x28] sm:$0xff]
          %v560 = vld [vmem:[#allocation2 + $0x30] sm:$0xff]
          %v561 = vld [vmem:[#allocation2 + $0x38] sm:$0xff]
          %v562 = vld [vmem:[#allocation2 + $0x40] sm:$0xff]
          %v563 = vld [vmem:[#allocation2 + $0x48] sm:$0xff]
          %v564 = vld [vmem:[#allocation2 + $0x50] sm:$0xff]
          %v565 = vld [vmem:[#allocation2 + $0x58] sm:$0xff]
          %v566 = vld [vmem:[#allocation2 + $0x60] sm:$0xff]
          %v567 = vld [vmem:[#allocation2 + $0x68] sm:$0xff]
          %v568 = vld [vmem:[#allocation2 + $0x70] sm:$0xff]
          %v569 = vld [vmem:[#allocation2 + $0x78] sm:$0xff]
          %v570 = vld [vmem:[%s255] sm:$0x1]
          %v572 = vlaneseq
          %v573 = vshrl.u32 %v572, 7
          %v574 = vsub.s32 0, %v573
          %v575 = vrot.slane %v570, %v574
          %v577 = vadd.f32 %v554, %v575
          %v578 = vadd.f32 %v555, %v575
          %v579 = vadd.f32 %v556, %v575
          %v580 = vadd.f32 %v557, %v575
          %v581 = vadd.f32 %v558, %v575
          %v582 = vadd.f32 %v559, %v575
          %v583 = vadd.f32 %v560, %v575
          %v584 = vadd.f32 %v561, %v575
          %v585 = vadd.f32 %v562, %v575
          %v586 = vadd.f32 %v563, %v575
          %v587 = vadd.f32 %v564, %v575
          %v588 = vadd.f32 %v565, %v575
          %v589 = vadd.f32 %v566, %v575
          %v590 = vadd.f32 %v567, %v575
          %v591 = vadd.f32 %v568, %v575
          %v592 = vadd.f32 %v569, %v575
          %v593 = vpack.c.bf16 %v578, %v577
          %v594 = vpack.c.bf16 %v580, %v579
          %v595 = vpack.c.bf16 %v582, %v581
          %v596 = vpack.c.bf16 %v584, %v583
          %v597 = vpack.c.bf16 %v586, %v585
          %v598 = vpack.c.bf16 %v588, %v587
          %v599 = vpack.c.bf16 %v590, %v589
          %v600 = vpack.c.bf16 %v592, %v591
          %v609 = vunpack.c.l.b16 %v593
          %v610 = vunpack.c.h.b16 %v593
          %v611 = vunpack.c.l.b16 %v594
          %v612 = vunpack.c.h.b16 %v594
          %v613 = vunpack.c.l.b16 %v595
          %v614 = vunpack.c.h.b16 %v595
          %v615 = vunpack.c.l.b16 %v596
          %v616 = vunpack.c.h.b16 %v596
          %v617 = vunpack.c.l.b16 %v597
          %v618 = vunpack.c.h.b16 %v597
          %v619 = vunpack.c.l.b16 %v598
          %v620 = vunpack.c.h.b16 %v598
          %v621 = vunpack.c.l.b16 %v599
          %v622 = vunpack.c.h.b16 %v599
          %v623 = vunpack.c.l.b16 %v600
          %v624 = vunpack.c.h.b16 %v600
          %v625 = vpack.c.b16 %v609, %v609
          %v626 = vpack.c.b16 %v610, %v610
          %v627 = vpack.c.b16 %v611, %v611
          %v628 = vpack.c.b16 %v612, %v612
          %v629 = vpack.c.b16 %v613, %v613
          %v630 = vpack.c.b16 %v614, %v614
          %v631 = vpack.c.b16 %v615, %v615
          %v632 = vpack.c.b16 %v616, %v616
          %v633 = vpack.c.b16 %v617, %v617
          %v634 = vpack.c.b16 %v618, %v618
          %v635 = vpack.c.b16 %v619, %v619
          %v636 = vpack.c.b16 %v620, %v620
          %v637 = vpack.c.b16 %v621, %v621
          %v638 = vpack.c.b16 %v622, %v622
          %v639 = vpack.c.b16 %v623, %v623
          %v640 = vpack.c.b16 %v624, %v624
          %657 = vst [vmem:[%s250] sm:$0xf] %v625
          %658 = vst [vmem:[%s250 + $0x4] sm:$0xf] %v626
          %659 = vst [vmem:[%s250 + $0x8] sm:$0xf] %v627
          %660 = vst [vmem:[%s250 + $0xc] sm:$0xf] %v628
          %661 = vst [vmem:[%s250 + $0x10] sm:$0xf] %v629
          %662 = vst [vmem:[%s250 + $0x14] sm:$0xf] %v630
          %663 = vst [vmem:[%s250 + $0x18] sm:$0xf] %v631
          %664 = vst [vmem:[%s250 + $0x1c] sm:$0xf] %v632
          %665 = vst [vmem:[%s250 + $0x20] sm:$0xf] %v633
          %666 = vst [vmem:[%s250 + $0x24] sm:$0xf] %v634
          %667 = vst [vmem:[%s250 + $0x28] sm:$0xf] %v635
          %668 = vst [vmem:[%s250 + $0x2c] sm:$0xf] %v636
          %669 = vst [vmem:[%s250 + $0x30] sm:$0xf] %v637
          %670 = vst [vmem:[%s250 + $0x34] sm:$0xf] %v638
          %671 = vst [vmem:[%s250 + $0x38] sm:$0xf] %v639
          %672 = vst [vmem:[%s250 + $0x3c] sm:$0xf] %v640
        $region48: #{_matmul_padded.1} parent=31 // pred_fallthru
          _
        %s673 = sand.u32 %s132, 1
        %s674 = scalar_lea.sflag [#allocation5], %s673
        %s675 = sand.u32 %s132, 1
        %s676 = smul.addr %s675, 64
        %s677 = scalar_lea.vmem [#allocation8], %s676
        // Predicated region
        $region49: #{_matmul_padded.1} parent=31 // pred_check
          %p678 = pneg %p142
        $region50: #{_matmul_padded.1} parent=31 // pred_check_branch
          %680 = sbr.rel (%p678) target = $region52
        $region51: #{_matmul_padded.1} parent=31 // pred_region
          %s681 = smul.u32 16, %s26
          %s683 = ssub.s32 1024, 1024
          %684 = vsyncadd %s674, %s683
          %s685 = smul.addr %s681, 3
          %s686 = sadd.s32 %s27, %s685
          %s687 = smul.addr %s686, 64
          %s688 = scalar_lea.hbm %s3, %s687
          %s689 = sshll.u32 %s677, 4
          %s690 = int_to_ptr.vmem [resolvable:$true] %s689
          %695 = dma.vmem_to_hbm [thread:$0]  %s690, 1024, %s688, %s674, 64, 192, 4
        $region52: #{_matmul_padded.1} parent=31 // pred_fallthru
          _
      $region32: #{_matmul_padded.1} parent=5 // pred_fallthru
        _
      %p696 = scmp.le.s32.totalorder 2, %s16
      // Predicated region
      $region53: #{_matmul_padded.1} parent=5 // pred_check
        %p697 = pneg %p696
      $region54: #{_matmul_padded.1} parent=5 // pred_check_branch
        %699 = sbr.rel (%p697) target = $region56
      $region55: #{_matmul_padded.1} parent=5 // pred_region
        %s700 = ssub.s32 %s16, 2
        // Predicated region
        $region57: #{_matmul_padded.1} parent=55 // pred_check
          %p701 = pneg %p148
        $region58: #{_matmul_padded.1} parent=55 // pred_check_branch
          %703 = sbr.rel (%p701) target = $region60
        $region59: #{_matmul_padded.1} parent=55 // pred_region
          %s704 = sand.u32 %s133, 1
          %s705 = scalar_lea.sflag [#allocation5], %s704
          %s706 = sand.u32 %s133, 1
          %s707 = smul.addr %s706, 64
          %s708 = scalar_lea.vmem [#allocation8], %s707
          %709 = dma.done %s705, 1024
        $region60: #{_matmul_padded.1} parent=55 // pred_fallthru
          _
      $region56: #{_matmul_padded.1} parent=5 // pred_fallthru
        _
    $region6: #{_matmul_padded.1} parent=1 // loop_footer
      %s20 = sadd.s32 1, %s16
    $region7: #{_matmul_padded.1} parent=1 // loop_footer_branch
      %15 = sbr.rel target = $region3
    $region8: #{_matmul_padded.1} parent=1 // loop_exit
      _
    %710 = vsyncpa [#allocation4], 1
    %s711 = scalar_lea.sflag [#allocation4], 1
    %712 = vsyncpa %s711, 1
    %713 = vsyncpa [#allocation7], 1
    %s714 = scalar_lea.sflag [#allocation7], 1
    %715 = vsyncpa %s714, 1
    %716 = vsyncpa [#allocation5], 1
    %s717 = scalar_lea.sflag [#allocation5], 1
    %718 = vsyncpa %s717, 1

</llo_original>
